<compile_context>
chip_gen: v7x
topology: tpu7x:2x2x1
jax: 0.10.0
libtpu: 0.0.40
codegen_flags: <defaults>
</compile_context>

<pallas_src>
import functools

import jax
import jax.numpy as jnp
from jax import lax
from jax.experimental import pallas as pl
from jax.experimental.pallas import tpu as pltpu


# ---------------------------------------------------------------------------
# Kernels
# ---------------------------------------------------------------------------

def _ccbn_train_kernel(x_ref, g_ref, b_ref, o_ref, *, eps, inv_count):
    """Fused ccbn, training mode. One channel block, full N and full H*W.

    x_ref : (N, bc, HWp)   activations
    g_ref : (N, bc, 1)     per-sample/per-channel gain (already 1 + Wg y + bg)
    b_ref : (N, bc, 1)     per-sample/per-channel bias
    o_ref : (N, bc, HWp)
    """
    n = x_ref.shape[0]
    # Sum over the batch axis first (cheap VALU adds), a single cross-lane
    # reduce at the end; s1 and s2 in the same pass, no full-tile fp32 temp.
    p1 = x_ref[0].astype(jnp.float32)                      # (bc, HWp)
    p2 = p1 * p1
    for i in range(1, n):
        v = x_ref[i].astype(jnp.float32)
        p1 = p1 + v
        p2 = p2 + v * v
    s1 = jnp.sum(p1, axis=-1, keepdims=True)               # (bc, 1)
    s2 = jnp.sum(p2, axis=-1, keepdims=True)               # (bc, 1)
    mean = s1 * inv_count
    var = jnp.maximum(s2 * inv_count - mean * mean, 0.0)   # guard cancellation
    inv_std = lax.rsqrt(var + eps)                         # EUP

    scale = g_ref[...].astype(jnp.float32) * inv_std[None]          # (N, bc, 1)
    shift = b_ref[...].astype(jnp.float32) - mean[None] * scale     # (N, bc, 1)
    o_ref[...] = (x_ref[...].astype(jnp.float32) * scale + shift).astype(o_ref.dtype)


def _ccbn_stats_kernel(x_ref, s1_ref, s2_ref):
    """Pass 1 of the large-activation fallback: per-channel sums over (N, HW),
    accumulated across the (last, "arbitrary") HW grid axis.

    x_ref : (N, bc, bhw)
    s1_ref, s2_ref : (bc, 1) fp32, output-resident accumulators
    """
    @pl.when(pl.program_id(1) == 0)
    def _():
        s1_ref[...] = jnp.zeros_like(s1_ref)
        s2_ref[...] = jnp.zeros_like(s2_ref)

    n = x_ref.shape[0]
    p1 = x_ref[0].astype(jnp.float32)
    p2 = p1 * p1
    for i in range(1, n):
        v = x_ref[i].astype(jnp.float32)
        p1 = p1 + v
        p2 = p2 + v * v
    s1_ref[...] += jnp.sum(p1, axis=-1, keepdims=True)
    s2_ref[...] += jnp.sum(p2, axis=-1, keepdims=True)


def _ccbn_apply_kernel(x_ref, g_ref, b_ref, mean_ref, var_ref, o_ref, *, eps):
    """Normalize + conditionally modulate given per-channel statistics.
    Used for eval mode and for pass 2 of the training fallback.

    x_ref : (N, bc, bhw); g_ref/b_ref : (N, bc, 1); mean_ref/var_ref : (bc, 1)
    """
    mean = mean_ref[...].astype(jnp.float32)                       # (bc, 1)
    var = jnp.maximum(var_ref[...].astype(jnp.float32), 0.0)
    inv_std = lax.rsqrt(var + eps)
    scale = g_ref[...].astype(jnp.float32) * inv_std[None]         # (N, bc, 1)
    shift = b_ref[...].astype(jnp.float32) - mean[None] * scale
    o_ref[...] = (x_ref[...].astype(jnp.float32) * scale + shift).astype(o_ref.dtype)


# ---------------------------------------------------------------------------
# Tiling helpers (generation-aware VMEM budgeting)
# ---------------------------------------------------------------------------

def _vmem_capacity_bytes():
    try:
        cap = int(pltpu.get_tpu_info().vmem_capacity_bytes)
        if cap > 0:
            return cap
    except Exception:
        pass
    return 64 * 1024 * 1024        # conservative fallback: v7x per-TC VMEM


def _sublane_multiple(itemsize):
    # fp32 -> 8 rows per sublane tile, bf16 -> 16, int8/fp8 -> 32
    return {4: 8, 2: 16, 1: 32}.get(int(itemsize), 8)


def _block_bytes(n_elems, itemsize):
    # Double-buffered input + output tiles in the x dtype, plus ~3 fp32
    # tile-equivalents of in-kernel temporaries (casts, partials, pre-store
    # fp32 result).
    return n_elems * (4 * itemsize + 3 * 4)


def _pick_channel_block(C, N, HWp, itemsize, budget, sublane, target_steps=8):
    """Largest channel block that (a) respects the dtype sublane multiple,
    (b) keeps at least ~target_steps grid steps for pipelining / megacore,
    (c) fits the VMEM budget including temporaries.  Ragged last blocks are
    allowed (per-channel stats cannot be contaminated by pad channels)."""
    def fits(bc):
        return _block_bytes(N * bc * HWp, itemsize) <= budget

    if C <= sublane:
        return C, fits(C)          # full-extent block (bypasses sublane rule)

    cap = max(sublane, -(-C // target_steps))       # keep >= target_steps steps
    bc = max(sublane, (cap // sublane) * sublane)
    while bc > sublane and not fits(bc):
        bc -= sublane
    return bc, fits(bc)


def _pick_hw_block(HWp, N, bc, itemsize, budget):
    """Largest lane-dense HW block that divides HWp and fits the budget."""
    n128 = HWp // 128
    for d in range(n128, 0, -1):
        if n128 % d == 0 and _block_bytes(N * bc * 128 * d, itemsize) <= budget:
            return 128 * d
    return 128


# ---------------------------------------------------------------------------
# Wrapper
# ---------------------------------------------------------------------------

def ccbn_forward(x, y, params, *, eps=1e-5, training=True, max_block_bytes=None):
    """Forward of ccbn: x (N, C, H, W), y (N, K) -> (N, C, H, W)."""
    N, C, H, W = x.shape
    HW = H * W
    itemsize = jnp.dtype(x.dtype).itemsize
    sublane = _sublane_multiple(itemsize)

    vmem_cap = _vmem_capacity_bytes()
    budget = int(vmem_cap * 0.30) if max_block_bytes is None else int(max_block_bytes)
    vmem_limit = int(vmem_cap * 0.65)

    def _cparams(sem):
        return pltpu.CompilerParams(dimension_semantics=sem,
                                    vmem_limit_bytes=vmem_limit)

    # Conditioning affine: a tiny (N,K)x(K,C) GEMM badly under-fills the MXU
    # inside the kernel, so do it once here (negligible HBM traffic).
    yf = y.astype(jnp.float32)
    gain = (1.0 + yf @ params["gain_w"].astype(jnp.float32).T
            + params["gain_b"].astype(jnp.float32))                 # (N, C)
    bias = (yf @ params["bias_w"].astype(jnp.float32).T
            + params["bias_b"].astype(jnp.float32))                 # (N, C)
    gain3 = gain[:, :, None]                                        # (N, C, 1)
    bias3 = bias[:, :, None]

    # Lane-dense spatial layout: pad H*W up to a multiple of 128.  Zero padding
    # does not change the batch sums; padded columns are sliced away below.
    # TODO(synk): for tiny feature maps (HW << 128) folding channels onto the
    #             lane axis would avoid the padding read/write amplification.
    HWp = ((HW + 127) // 128) * 128
    x3 = x.reshape(N, C, HW)
    if HWp != HW:
        x3 = jnp.pad(x3, ((0, 0), (0, 0), (0, HWp - HW)))

    bc, full_hw_fits = _pick_channel_block(C, N, HWp, itemsize, budget, sublane)

    # ------------------------ fast path: fused training --------------------
    if training and full_hw_fits:
        nc = pl.cdiv(C, bc)
        kernel = functools.partial(_ccbn_train_kernel, eps=float(eps),
                                   inv_count=1.0 / float(N * HW))
        out3 = pl.pallas_call(
            kernel,
            out_shape=jax.ShapeDtypeStruct((N, C, HWp), x.dtype),
            grid_spec=pltpu.PrefetchScalarGridSpec(
                num_scalar_prefetch=0,
                grid=(nc,),
                in_specs=[
                    pl.BlockSpec((N, bc, HWp), lambda c: (0, c, 0)),
                    pl.BlockSpec((N, bc, 1), lambda c: (0, c, 0)),
                    pl.BlockSpec((N, bc, 1), lambda c: (0, c, 0)),
                ],
                out_specs=pl.BlockSpec((N, bc, HWp), lambda c: (0, c, 0)),
            ),
            compiler_params=_cparams(("parallel",)),
        )(x3, gain3, bias3)
        out3 = out3[:, :, :HW] if HWp != HW else out3
        return out3.reshape(N, C, H, W)

    # --------------------- HW-tiled path (eval / fallback) -----------------
    if full_hw_fits:
        bhw = HWp
    else:
        bhw = _pick_hw_block(HWp, N, bc, itemsize, budget)
    nc = pl.cdiv(C, bc)
    nhw = HWp // bhw

    if training:
        # Pass 1: per-channel batch sums, accumulated across HW tiles.
        s1, s2 = pl.pallas_call(
            _ccbn_stats_kernel,
            out_shape=(jax.ShapeDtypeStruct((C, 1), jnp.float32),
                       jax.ShapeDtypeStruct((C, 1), jnp.float32)),
            grid_spec=pltpu.PrefetchScalarGridSpec(
                num_scalar_prefetch=0,
                grid=(nc, nhw),
                in_specs=[pl.BlockSpec((N, bc, bhw), lambda c, h: (0, c, h))],
                out_specs=[pl.BlockSpec((bc, 1), lambda c, h: (c, 0)),
                           pl.BlockSpec((bc, 1), lambda c, h: (c, 0))],
            ),
            compiler_params=_cparams(("parallel", "arbitrary")),
        )(x3)
        inv_count = 1.0 / float(N * HW)
        mean = s1 * inv_count
        var = jnp.maximum(s2 * inv_count - mean * mean, 0.0)
    else:
        mean = params["stored_mean"].astype(jnp.float32).reshape(C, 1)
        var = params["stored_var"].astype(jnp.float32).reshape(C, 1)

    kernel = functools.partial(_ccbn_apply_kernel, eps=float(eps))
    out3 = pl.pallas_call(
        kernel,
        out_shape=jax.ShapeDtypeStruct((N, C, HWp), x.dtype),
        grid_spec=pltpu.PrefetchScalarGridSpec(
            num_scalar_prefetch=0,
            grid=(nc, nhw),
            in_specs=[
                pl.BlockSpec((N, bc, bhw), lambda c, h: (0, c, h)),
                pl.BlockSpec((N, bc, 1), lambda c, h: (0, c, 0)),
                pl.BlockSpec((N, bc, 1), lambda c, h: (0, c, 0)),
                pl.BlockSpec((bc, 1), lambda c, h: (c, 0)),
                pl.BlockSpec((bc, 1), lambda c, h: (c, 0)),
            ],
            out_specs=pl.BlockSpec((N, bc, bhw), lambda c, h: (0, c, h)),
        ),
        compiler_params=_cparams(("parallel", "parallel")),
    )(x3, gain3, bias3, mean, var)
    out3 = out3[:, :, :HW] if HWp != HW else out3
    return out3.reshape(N, C, H, W)


# ---------------------------------------------------------------------------
# Pure-JAX reference (mirrors the PyTorch forward) for correctness checks
# ---------------------------------------------------------------------------

def ccbn_reference(x, y, params, *, eps=1e-5, training=True):
    gain = 1.0 + y @ params["gain_w"].T + params["gain_b"]
    bias = y @ params["bias_w"].T + params["bias_b"]
    gain = gain[:, :, None, None]
    bias = bias[:, :, None, None]
    if training:
        mean = jnp.mean(x, axis=(0, 2, 3), keepdims=True)
        var = jnp.mean((x - mean) ** 2, axis=(0, 2, 3), keepdims=True)
    else:
        mean = params["stored_mean"].reshape(1, -1, 1, 1)
        var = params["stored_var"].reshape(1, -1, 1, 1)
    x_hat = (x - mean) * lax.rsqrt(var + eps)
    return x_hat * gain + bias


def _make_params(key, C, K):
    k1, k2, k3, k4, k5 = jax.random.split(key, 5)
    return {
        "gain_w": jax.random.normal(k1, (C, K), jnp.float32) * 0.1,
        "gain_b": jax.random.normal(k2, (C,), jnp.float32) * 0.1,
        "bias_w": jax.random.normal(k3, (C, K), jnp.float32) * 0.1,
        "bias_b": jax.random.normal(k4, (C,), jnp.float32) * 0.1,
        "stored_mean": jax.random.normal(k5, (C,), jnp.float32) * 0.05,
        "stored_var": jnp.ones((C,), jnp.float32),
    }


if __name__ == "__main__":
    key = jax.random.PRNGKey(0)
    kx, ky, kp, kx2, kp2 = jax.random.split(key, 5)

    N, C, H, W = 2, 4, 16, 16      # x: (N, C, H, W)
    K = 8                          # conditioning (input_size) dim

    x = jax.random.normal(kx, (N, C, H, W), jnp.float32)
    y = jax.random.normal(ky, (N, K), jnp.float32)
    params = _make_params(kp, C, K)

    # 1) Training mode (module default): fused single-pass kernel.
    out_train = ccbn_forward(x, y, params, training=True)
    jax.block_until_ready(out_train)
    ref_train = ccbn_reference(x, y, params, training=True)
    assert out_train.shape == (N, C, H, W)
    assert jnp.allclose(out_train, ref_train, atol=1e-3, rtol=1e-3), \
        float(jnp.max(jnp.abs(out_train - ref_train)))

    # 2) Eval mode: stored running statistics (apply kernel).
    out_eval = ccbn_forward(x, y, params, training=False)
    jax.block_until_ready(out_eval)
    ref_eval = ccbn_reference(x, y, params, training=False)
    assert jnp.allclose(out_eval, ref_eval, atol=1e-3, rtol=1e-3), \
        float(jnp.max(jnp.abs(out_eval - ref_eval)))

    # 3) Force the HW-tiled large-activation fallback (stats + apply passes)
    #    with a deliberately tiny block budget.
    out_fb = ccbn_forward(x, y, params, training=True, max_block_bytes=1024)
    jax.block_until_ready(out_fb)
    assert jnp.allclose(out_fb, ref_train, atol=1e-3, rtol=1e-3), \
        float(jnp.max(jnp.abs(out_fb - ref_train)))
    out_fb_eval = ccbn_forward(x, y, params, training=False, max_block_bytes=1024)
    jax.block_until_ready(out_fb_eval)
    assert jnp.allclose(out_fb_eval, ref_eval, atol=1e-3, rtol=1e-3), \
        float(jnp.max(jnp.abs(out_fb_eval - ref_eval)))

    # 4) Non-multiple-of-128 spatial size exercises the lane-padding path.
    x2 = jax.random.normal(kx2, (2, 8, 6, 6), jnp.float32)
    params2 = _make_params(kp2, 8, K)
    out2 = ccbn_forward(x2, y, params2, training=True)
    jax.block_until_ready(out2)
    ref2 = ccbn_reference(x2, y, params2, training=True)
    assert jnp.allclose(out2, ref2, atol=1e-3, rtol=1e-3), \
        float(jnp.max(jnp.abs(out2 - ref2)))

    print("KERNEL_OK")
</pallas_src>

<mosaic_0001>
module attributes {stable_mosaic.version = 11 : i64} {
  func.func @_ccbn_train_kernel(%arg0: i32, %arg1: memref<2x4x256xf32, #tpu.memory_space<vmem>>, %arg2: memref<2x4x1xf32, #tpu.memory_space<vmem>>, %arg3: memref<2x4x1xf32, #tpu.memory_space<vmem>>, %arg4: memref<2x4x256xf32, #tpu.memory_space<vmem>>) attributes {dimension_semantics = [#tpu.dimension_semantics<parallel>], iteration_bounds = array<i64: 1>, scalar_prefetch = 0 : i64, scratch_operands = 0 : i64, tpu.core_type = #tpu.core_type<tc>, window_params = [{transform_indices = @transform_0, window_bounds = array<i64: 2, 4, 256>}, {transform_indices = @transform_1, window_bounds = array<i64: 2, 4, 1>}, {transform_indices = @transform_2, window_bounds = array<i64: 2, 4, 1>}, {transform_indices = @transform_3, window_bounds = array<i64: 2, 4, 256>}]} {
    %c0 = arith.constant 0 : index
    %c0_0 = arith.constant 0 : index
    %c0_1 = arith.constant 0 : index
    %0 = vector.load %arg1[%c0, %c0_0, %c0_1] : memref<2x4x256xf32, #tpu.memory_space<vmem>>, vector<1x4x256xf32>
    %1 = vector.shape_cast %0 : vector<1x4x256xf32> to vector<4x256xf32>
    %2 = arith.mulf %1, %1 : vector<4x256xf32>
    %c1 = arith.constant 1 : index
    %c0_2 = arith.constant 0 : index
    %c0_3 = arith.constant 0 : index
    %3 = vector.load %arg1[%c1, %c0_2, %c0_3] : memref<2x4x256xf32, #tpu.memory_space<vmem>>, vector<1x4x256xf32>
    %4 = vector.shape_cast %3 : vector<1x4x256xf32> to vector<4x256xf32>
    %5 = arith.addf %1, %4 : vector<4x256xf32>
    %6 = arith.mulf %4, %4 : vector<4x256xf32>
    %7 = arith.addf %2, %6 : vector<4x256xf32>
    %cst = arith.constant dense<0.000000e+00> : vector<4xf32>
    %8 = vector.multi_reduction <add>, %5, %cst [1] : vector<4x256xf32> to vector<4xf32>
    %9 = vector.shape_cast %8 : vector<4xf32> to vector<4x1xf32>
    %cst_4 = arith.constant dense<0.000000e+00> : vector<4xf32>
    %10 = vector.multi_reduction <add>, %7, %cst_4 [1] : vector<4x256xf32> to vector<4xf32>
    %11 = vector.shape_cast %10 : vector<4xf32> to vector<4x1xf32>
    %cst_5 = arith.constant 0.001953125 : f32
    %12 = vector.broadcast %cst_5 : f32 to vector<4x1xf32>
    %13 = arith.mulf %9, %12 : vector<4x1xf32>
    %cst_6 = arith.constant 0.001953125 : f32
    %14 = vector.broadcast %cst_6 : f32 to vector<4x1xf32>
    %15 = arith.mulf %11, %14 : vector<4x1xf32>
    %16 = arith.mulf %13, %13 : vector<4x1xf32>
    %17 = arith.subf %15, %16 : vector<4x1xf32>
    %cst_7 = arith.constant 0.000000e+00 : f32
    %18 = vector.broadcast %cst_7 : f32 to vector<4x1xf32>
    %19 = arith.maximumf %17, %18 : vector<4x1xf32>
    %cst_8 = arith.constant 9.99999974E-6 : f32
    %20 = vector.broadcast %cst_8 : f32 to vector<4x1xf32>
    %21 = arith.addf %19, %20 : vector<4x1xf32>
    %22 = math.rsqrt %21 : vector<4x1xf32>
    %c0_9 = arith.constant 0 : index
    %c0_10 = arith.constant 0 : index
    %c0_11 = arith.constant 0 : index
    %23 = vector.load %arg2[%c0_9, %c0_10, %c0_11] : memref<2x4x1xf32, #tpu.memory_space<vmem>>, vector<2x4x1xf32>
    %24 = vector.shape_cast %22 : vector<4x1xf32> to vector<1x4x1xf32>
    %25 = vector.broadcast %24 : vector<1x4x1xf32> to vector<2x4x1xf32>
    %26 = arith.mulf %23, %25 : vector<2x4x1xf32>
    %c0_12 = arith.constant 0 : index
    %c0_13 = arith.constant 0 : index
    %c0_14 = arith.constant 0 : index
    %27 = vector.load %arg3[%c0_12, %c0_13, %c0_14] : memref<2x4x1xf32, #tpu.memory_space<vmem>>, vector<2x4x1xf32>
    %28 = vector.shape_cast %13 : vector<4x1xf32> to vector<1x4x1xf32>
    %29 = vector.broadcast %28 : vector<1x4x1xf32> to vector<2x4x1xf32>
    %30 = arith.mulf %29, %26 : vector<2x4x1xf32>
    %31 = arith.subf %27, %30 : vector<2x4x1xf32>
    %c0_15 = arith.constant 0 : index
    %c0_16 = arith.constant 0 : index
    %c0_17 = arith.constant 0 : index
    %32 = vector.load %arg1[%c0_15, %c0_16, %c0_17] : memref<2x4x256xf32, #tpu.memory_space<vmem>>, vector<2x4x256xf32>
    %33 = vector.broadcast %26 : vector<2x4x1xf32> to vector<2x4x256xf32>
    %34 = arith.mulf %32, %33 : vector<2x4x256xf32>
    %35 = vector.broadcast %31 : vector<2x4x1xf32> to vector<2x4x256xf32>
    %36 = arith.addf %34, %35 : vector<2x4x256xf32>
    %c0_18 = arith.constant 0 : index
    %c0_19 = arith.constant 0 : index
    %c0_20 = arith.constant 0 : index
    %37 = vector.load %arg4[%c0_18, %c0_19, %c0_20] : memref<2x4x256xf32, #tpu.memory_space<vmem>>, vector<2x4x256xf32>
    tpu.vector_store %arg4[%c0_18, %c0_19, %c0_20], %36 {strides = array<i32>} : memref<2x4x256xf32, #tpu.memory_space<vmem>>, vector<2x4x256xf32>,
    return
  }
  func.func @transform_0(%arg0: i32) -> (i32, i32, i32) {
    %c0_i32 = arith.constant 0 : i32
    %c0_i32_0 = arith.constant 0 : i32
    %c0_i32_1 = arith.constant 0 : i32
    return %c0_i32, %arg0, %c0_i32_0 : i32, i32, i32
  }
  func.func @transform_1(%arg0: i32) -> (i32, i32, i32) {
    %c0_i32 = arith.constant 0 : i32
    %c0_i32_0 = arith.constant 0 : i32
    %c0_i32_1 = arith.constant 0 : i32
    return %c0_i32, %arg0, %c0_i32_0 : i32, i32, i32
  }
  func.func @transform_2(%arg0: i32) -> (i32, i32, i32) {
    %c0_i32 = arith.constant 0 : i32
    %c0_i32_0 = arith.constant 0 : i32
    %c0_i32_1 = arith.constant 0 : i32
    return %c0_i32, %arg0, %c0_i32_0 : i32, i32, i32
  }
  func.func @transform_3(%arg0: i32) -> (i32, i32, i32) {
    %c0_i32 = arith.constant 0 : i32
    %c0_i32_0 = arith.constant 0 : i32
    %c0_i32_1 = arith.constant 0 : i32
    return %c0_i32, %arg0, %c0_i32_0 : i32, i32, i32
  }
}

</mosaic_0001>

<llo_original>
// kernel: tpu_custom_call.1
$region0: #{tpu_custom_call.1}
  #allocation0 [shape = 'u32[]', space=smem, size = 0x4, offset = 0x4, fixed_abs, tag = 'smem constant byte address 0x4 - core index']
  #allocation1 [shape = 'u32[144,128]{1,0:T(1,128)}', space=vmem, size = 0x12000, scoped, tag = 'internal scratch']
  %s0 = inlined_call_operand.vmem [shape: f32[2,4,256], index: 0, kind: input, shape index: {}]
  %s1 = inlined_call_operand.vmem [shape: f32[2,4,1], index: 1, kind: input, shape index: {}]
  %s2 = inlined_call_operand.vmem [shape: f32[2,4,1], index: 2, kind: input, shape index: {}]
  %s3 = inlined_call_operand.hbm [shape: f32[2,4,256], index: 3, kind: output, shape index: {}]
  %s4 = sld [smem:[#allocation0]]
  $region22: #{tpu_custom_call.1} parent=0
    _
  %s6 = ssub.s32 1, %s4
  %s7 = scalar_select 0, %s6, %s4
  $region1: #{tpu_custom_call.1} parent=0
    #allocation2 [shape = 'u8[8192]{0}', space=vmem, size = 0x2000, scoped, tag = 'output window, operand 0, single buffered']
    #allocation3 [shape = 's32[1]{0}', space=sflag, size = 0x4, scoped, tag = 'scoped memory for tpu_custom_call.1']
    %8 = vsyncpa [#allocation3], 0
    // Predicated region
    $region2: #{tpu_custom_call.1} parent=1 // pred_check
      _
    $region3: #{tpu_custom_call.1} parent=1 // pred_check_branch
      %10 = sbr.rel (0) target = $region5
    $region4: #{tpu_custom_call.1} parent=1 // pred_region
      _
    $region5: #{tpu_custom_call.1} parent=1 // pred_fallthru
      _
    // Predicated region
    $region6: #{tpu_custom_call.1} parent=1 // pred_check
      _
    $region7: #{tpu_custom_call.1} parent=1 // pred_check_branch
      %12 = sbr.rel (0) target = $region9
    $region8: #{tpu_custom_call.1} parent=1 // pred_region
      _
    $region9: #{tpu_custom_call.1} parent=1 // pred_fallthru
      _
    // Predicated region
    $region10: #{tpu_custom_call.1} parent=1 // pred_check
      _
    $region11: #{tpu_custom_call.1} parent=1 // pred_check_branch
      %14 = sbr.rel (0) target = $region13
    $region12: #{tpu_custom_call.1} parent=1 // pred_region
      _
    $region13: #{tpu_custom_call.1} parent=1 // pred_fallthru
      _
    %v15 = vld [vmem:[%s0] sm:$0xff]
    %v16 = vmul.f32 %v15, %v15
    %s17 = scalar_lea.vmem %s0, 8
    %v18 = vld [vmem:[%s17] sm:$0xff]
    %v19 = vadd.f32 %v15, %v18
    %v20 = vmul.f32 %v18, %v18
    %v21 = vadd.f32 %v16, %v20
    %v23 = vcombine.high %v19, %v19
    %vm25 = vcmask 1043456
    %v26 = vsel %vm25, %v19, 0.0
    %v27 = vsel %vm25, %v23, 0.0
    %v28 = vadd.f32 %v26, %v27
    %29 = vadd.xlane.f32.xlu0 %v28
    %v30 = vpop.xlane.xlu0 %29
    %v32 = vcombine.high %v21, %v21
    %v34 = vsel %vm25, %v21, 0.0
    %v35 = vsel %vm25, %v32, 0.0
    %v36 = vadd.f32 %v34, %v35
    %37 = vadd.xlane.f32.xlu0 %v36
    %v38 = vpop.xlane.xlu0 %37
    %v39 = vmul.f32 %v30, 0.001953125
    %v40 = vmul.f32 %v38, 0.001953125
    %v41 = vmul.f32 %v39, %v39
    %v42 = vsub.f32 %v40, %v41
    %v43 = vmax.f32 %v42, 0.0
    %v44 = vadd.f32 %v43, 1e-05
    %v45 = vrsqrt.pop %v44
    %v46 = vld [vmem:[%s1] sm:$0xf]
    %v47 = vld [vmem:[%s1 + $0x4] sm:$0xf]
    %v48 = vmul.f32 %v46, %v45
    %v49 = vmul.f32 %v47, %v45
    %v50 = vld [vmem:[%s2] sm:$0xf]
    %v51 = vld [vmem:[%s2 + $0x4] sm:$0xf]
    %v52 = vmul.f32 %v39, %v48
    %v53 = vmul.f32 %v39, %v49
    %v54 = vsub.f32 %v50, %v52
    %v55 = vsub.f32 %v51, %v53
    %v56 = vld [vmem:[%s0] sm:$0xff]
    %v57 = vld [vmem:[%s0 + $0x8] sm:$0xff]
    %59 = vset.pattern.permute.xlu0 0
    %60 = vperm.xlu0 %59, %v48
    %v61 = vpop.permute.xlu0 %60
    %63 = vset.pattern.permute.xlu0 0
    %64 = vperm.xlu0 %63, %v49
    %v65 = vpop.permute.xlu0 %64
    %v67 = vunpack.c.l.s4 839922192
    %v68 = vunpack.c.0.s8 %v67
    %v69 = vlaneseq
    %v70 = vshrl.u32 %v69, 7
    %v71 = vsub.s32 %v68, %v70
    %v72 = vrot.slane %v61, %v71
    %v74 = vunpack.c.l.s4 839922192
    %v75 = vunpack.c.0.s8 %v74
    %v76 = vlaneseq
    %v77 = vshrl.u32 %v76, 7
    %v78 = vsub.s32 %v75, %v77
    %v79 = vrot.slane %v65, %v78
    %v82 = vmul.f32 %v56, %v72
    %v83 = vmul.f32 %v57, %v79
    %85 = vset.pattern.permute.xlu0 0
    %86 = vperm.xlu0 %85, %v54
    %v87 = vpop.permute.xlu0 %86
    %89 = vset.pattern.permute.xlu0 0
    %90 = vperm.xlu0 %89, %v55
    %v91 = vpop.permute.xlu0 %90
    %v93 = vunpack.c.l.s4 839922192
    %v94 = vunpack.c.0.s8 %v93
    %v95 = vlaneseq
    %v96 = vshrl.u32 %v95, 7
    %v97 = vsub.s32 %v94, %v96
    %v98 = vrot.slane %v87, %v97
    %v100 = vunpack.c.l.s4 839922192
    %v101 = vunpack.c.0.s8 %v100
    %v102 = vlaneseq
    %v103 = vshrl.u32 %v102, 7
    %v104 = vsub.s32 %v101, %v103
    %v105 = vrot.slane %v91, %v104
    %v108 = vadd.f32 %v82, %v98
    %v109 = vadd.f32 %v83, %v105
    %110 = vst [vmem:[#allocation2] sm:$0xff] %v108
    %111 = vst [vmem:[#allocation2 + $0x8] sm:$0xff] %v109
    // Predicated region
    $region14: #{tpu_custom_call.1} parent=1 // pred_check
      _
    $region15: #{tpu_custom_call.1} parent=1 // pred_check_branch
      %113 = sbr.rel (0) target = $region17
    $region16: #{tpu_custom_call.1} parent=1 // pred_region
      %s115 = ssub.s32 256, 256
      %116 = vsyncadd [#allocation3], %s115
      %s117 = sshll.u32 [#allocation2], 4
      %s118 = int_to_ptr.vmem [resolvable:$true] %s117
      %123 = dma.vmem_to_hbm [thread:$0]  %s118, 256, %s3, [#allocation3], 128, 128, 8
    $region17: #{tpu_custom_call.1} parent=1 // pred_fallthru
      _
    // Predicated region
    $region18: #{tpu_custom_call.1} parent=1 // pred_check
      _
    $region19: #{tpu_custom_call.1} parent=1 // pred_check_branch
      %125 = sbr.rel (0) target = $region21
    $region20: #{tpu_custom_call.1} parent=1 // pred_region
      %126 = dma.done [#allocation3], 256
    $region21: #{tpu_custom_call.1} parent=1 // pred_fallthru
      _
    %127 = vsyncpa [#allocation3], 1

</llo_original>
